<compile_context>
chip_gen: v6e
topology: v6e:2x2x1
jax: 0.10.0
libtpu: 0.0.40
codegen_flags: <defaults>
</compile_context>

<pallas_src>
import functools
import math

import jax
import jax.numpy as jnp
from jax import lax
from jax.experimental import pallas as pl
from jax.experimental.pallas import tpu as pltpu


_SUB = 8                 # one f32 vreg worth of rows: (8, 128) points per sub-chunk
_MAX_BLOCK_ROWS = 256    # rows of 128 points per grid step (32768 pts, 384 KiB/tile in)
_CHUNK_UNROLL = 4        # fori_loop unroll factor for the in-kernel chunk loop
_EPS = 1e-4
_TAN_PI_8 = 0.4142135623730951
_TAN_3PI_8 = 2.414213562373095
_SCAL_PER_B = 23         # 9 (R^T) + 3 (R^T p) + 11 derived superquadric scalars


# ----------------------------------------------------------------------------- glue
def quaternions_to_rotation_matrices(q):
    """q: (B, 4) as [w, x, y, z] -> (B, 3, 3). Standard superquadric-parsing convention."""
    w, x, y, z = q[:, 0], q[:, 1], q[:, 2], q[:, 3]
    n = w * w + x * x + y * y + z * z
    s = jnp.where(n > 0, 2.0 / n, 0.0)
    xx, yy, zz = s * x * x, s * y * y, s * z * z
    xy, xz, yz = s * x * y, s * x * z, s * y * z
    xw, yw, zw = s * x * w, s * y * w, s * z * w
    row0 = jnp.stack([1.0 - yy - zz, xy - zw, xz + yw], axis=-1)
    row1 = jnp.stack([xy + zw, 1.0 - xx - zz, yz - xw], axis=-1)
    row2 = jnp.stack([xz - yw, yz + xw, 1.0 - xx - yy], axis=-1)
    return jnp.stack([row0, row1, row2], axis=-2)


# ------------------------------------------------------------------- in-kernel math
def _fast_recip(x):
    """EUP approx reciprocal + one Newton-Raphson step: one vrcp per divide, ~f32 accurate."""
    r = pl.reciprocal(x, approx=True)
    return r * (2.0 - x * r)


def _atan2(y, x):
    """torch.atan2 semantics (incl. atan2(0,0)==0) using a SINGLE reciprocal per call.

    Range reduction is done directly on |y|, |x| via num/den selects (VPU), so the only
    EUP op is the one vrcp for num/den; the polynomial and sign fixup are VPU FMAs."""
    ay = jnp.abs(y)
    ax = jnp.maximum(jnp.abs(x), jnp.float32(1e-20))       # keeps the recip finite
    big = ay > jnp.float32(_TAN_3PI_8) * ax
    mid = jnp.logical_and(ay > jnp.float32(_TAN_PI_8) * ax, jnp.logical_not(big))
    num = jnp.where(big, -ax, jnp.where(mid, ay - ax, ay))
    den = jnp.where(big, ay, jnp.where(mid, ay + ax, ax))  # >= ~1e-20 in every branch
    tr = num * _fast_recip(den)
    y0 = jnp.where(big, jnp.float32(jnp.pi / 2),
                   jnp.where(mid, jnp.float32(jnp.pi / 4), jnp.float32(0.0)))
    z2 = tr * tr
    p = jnp.float32(8.05374449538e-2) * z2 - jnp.float32(1.38776856032e-1)
    p = p * z2 + jnp.float32(1.99777106478e-1)
    p = p * z2 - jnp.float32(3.33329491539e-1)
    qa = y0 + tr + tr * z2 * p                              # atan(|y|/|x|) in [0, pi/2]
    pi = jnp.float32(jnp.pi)
    half_pi = jnp.float32(jnp.pi / 2)
    sq = jnp.where(y < 0.0, -qa, qa)
    return jnp.where(
        x > 0.0, sq,
        jnp.where(x < 0.0,
                  jnp.where(y >= 0.0, pi - qa, qa - pi),
                  jnp.where(y > 0.0, half_pi,
                            jnp.where(y < 0.0, -half_pi, jnp.float32(0.0)))))


def _powf(base, expo):
    """pow for non-negative base via exp/log (Mosaic-safe).
    Invariant: every negative exponent only sees an eps-shifted base (>= eps);
    pow(0, e > 0) relies on exp(e*log(0)) == exp(-inf) == 0."""
    # TODO(synk): if bundle dumps still show EUP saturating, move this to VPU exp2/log2
    # polynomials (pltpu.bitcast exponent tricks), preserving the pow(0, e>0)==0 path.
    return jnp.exp(expo * jnp.log(base))


# ------------------------------------------------------------------------- kernel
def _dsq_psum_kernel(x_ref, scal_ref, psum_ref, *, n_chunks, rows_per_block,
                     n_valid, n_padded, unroll):
    b = pl.program_id(0)
    ti = pl.program_id(1)

    # ---- per-batch scalars from 1-D SMEM (hoisted above the vector hot loop) ----
    s0 = _SCAL_PER_B * b
    rt = [scal_ref[s0 + j] for j in range(9)]               # row-major R^T
    off = [scal_ref[s0 + 9 + j] for j in range(3)]          # R^T @ position
    a1 = scal_ref[s0 + 12]
    a2 = scal_ref[s0 + 13]
    ca = scal_ref[s0 + 14]
    sa = scal_ref[s0 + 15]
    inv_a3 = scal_ref[s0 + 16]
    k_over_a3 = scal_ref[s0 + 17]
    inv_b = scal_ref[s0 + 18]
    two_over_e2 = scal_ref[s0 + 19]
    two_over_e1 = scal_ref[s0 + 20]
    e2_over_e1 = scal_ref[s0 + 21]
    neg_half_e1 = scal_ref[s0 + 22]
    eps = jnp.float32(_EPS)

    mask_tail = n_valid < n_padded                           # static Python bool
    base = ti * (rows_per_block * 128)                       # global point offset of tile
    if mask_tail:
        idx0 = (lax.broadcasted_iota(jnp.int32, (_SUB, 128), 0) * 128
                + lax.broadcasted_iota(jnp.int32, (_SUB, 128), 1))

    # ---- hot loop: dense (8,128) point sub-chunks, accumulator carried in vregs ----
    def chunk(c, acc):
        r0 = pl.multiple_of(c * _SUB, _SUB)
        x0 = x_ref[0, pl.ds(r0, _SUB), :]                    # (8, 128)
        x1 = x_ref[1, pl.ds(r0, _SUB), :]
        x2 = x_ref[2, pl.ds(r0, _SUB), :]

        # rigid transform x_t = R^T x - R^T p (scalar-broadcast FMAs on the VPU)
        t0 = rt[0] * x0 + rt[1] * x1 + rt[2] * x2 - off[0]
        t1 = rt[3] * x0 + rt[4] * x1 + rt[5] * x2 - off[1]
        t2 = rt[6] * x0 + rt[7] * x1 + rt[8] * x2 - off[2]

        # Gross & Boult deformable superquadric distance.
        # (cos a cos(beta)+sin a sin(beta))*sqrt(x0^2+x1^2) == ca*x0 + sa*x1 (exact identity)
        Rr = ca * t0 + sa * t1
        d = inv_b - Rr
        rr = inv_b - jnp.sqrt(t2 * t2 + d * d)
        gamma = _atan2(t2, d)
        X = t0 - ca * (Rr - rr)
        Y = t1 - sa * (Rr - rr)
        Z = gamma * inv_b
        f = k_over_a3 * Z + 1.0
        den_x = jnp.abs(a1 * f) + eps
        den_y = jnp.abs(a2 * f) + eps
        rprod = _fast_recip(den_x * den_y)                   # one vrcp for both denoms
        term_x = _powf(jnp.abs(X) * (den_y * rprod), two_over_e2)
        term_y = _powf(jnp.abs(Y) * (den_x * rprod), two_over_e2)
        term_z = _powf(jnp.abs(Z * inv_a3), two_over_e1)
        beta_v = _powf(_powf(term_x + term_y, e2_over_e1) + term_z + eps, neg_half_e1)
        omb = 1.0 - beta_v
        # F^2 directly (final sqrt eliminated): F^2 = |x_t|^2 * (1 - beta)^2
        f2 = (t0 * t0 + t1 * t1 + t2 * t2) * (omb * omb)

        if mask_tail:
            pt = base + c * (_SUB * 128) + idx0              # global point index
            f2 = jnp.where(pt < n_valid, f2, jnp.float32(0.0))
        return acc + f2

    acc = lax.fori_loop(0, n_chunks, chunk,
                        jnp.zeros((_SUB, 128), jnp.float32), unroll=unroll)
    psum_ref[...] = acc


# ------------------------------------------------------------------------- wrapper
def deformable_superquadric_loss(x, l_gt, output, weight):
    """x: (B, 3, N) f32, l_gt: (B, 3) f32, output: (B, 16) f32 -> scalar f32 loss."""
    B, _, N = x.shape
    x = x.astype(jnp.float32)
    out32 = output.astype(jnp.float32)

    position = out32[:, :3]
    quat = out32[:, 3:7]
    rotation = quaternions_to_rotation_matrices(quat)              # (B, 3, 3)
    params = out32[:, 7:16]                                        # (B, 9)
    rotation_t = jnp.transpose(rotation, (0, 2, 1))

    # ---- per-batch scalar precompute (tiny XLA op; keeps the kernel hot loop clean) ----
    a1, a2, a3 = params[:, 0], params[:, 1], params[:, 2]
    e1, e2, kk = params[:, 3], params[:, 4], params[:, 5]
    bb = params[:, 6] / jnp.maximum(a1, a2)
    ca, sa = params[:, 7], params[:, 8]
    off = jnp.einsum('bij,bj->bi', rotation_t, position)           # R^T p
    scal = jnp.concatenate([
        rotation_t.reshape(B, 9), off,
        jnp.stack([a1, a2, ca, sa, 1.0 / a3, kk / a3, 1.0 / bb,
                   2.0 / e2, 2.0 / e1, e2 / e1, -0.5 * e1], axis=1)], axis=1)
    assert scal.shape == (B, _SCAL_PER_B)
    scal_flat = scal.reshape(-1)     # 1-D SMEM layout: no 2-D SMEM padding blow-up at large B

    # ---- dense (sublane, lane) layout: rows of 128 points, tiled along the rows axis ----
    n_rows = -(-N // 128)
    rows_per_block = min(_MAX_BLOCK_ROWS, _SUB * (-(-n_rows // _SUB)))
    n_tiles = -(-n_rows // rows_per_block)
    rows_pad = rows_per_block * n_tiles
    n_padded = rows_pad * 128

    if n_padded != N:                # skip the pad HBM round-trip when N is already dense
        x = jnp.pad(x, ((0, 0), (0, 0), (0, n_padded - N)))
    x4 = x.reshape(B, 3, rows_pad, 128)

    n_chunks = rows_per_block // _SUB
    unroll = math.gcd(n_chunks, _CHUNK_UNROLL)

    psum = pl.pallas_call(
        functools.partial(_dsq_psum_kernel, n_chunks=n_chunks,
                          rows_per_block=rows_per_block,
                          n_valid=N, n_padded=n_padded, unroll=unroll),
        out_shape=jax.ShapeDtypeStruct((B, n_tiles, _SUB, 128), jnp.float32),
        grid=(B, n_tiles),
        in_specs=[
            pl.BlockSpec((None, 3, rows_per_block, 128), lambda b, t: (b, 0, t, 0)),  # x tile
            pl.BlockSpec(memory_space=pltpu.MemorySpace.SMEM),                        # scalars
        ],
        out_specs=pl.BlockSpec((None, None, _SUB, 128), lambda b, t: (b, t, 0, 0)),
        compiler_params=pltpu.CompilerParams(
            dimension_semantics=("parallel", "parallel")),
    )(x4, scal_flat)

    # masked per-tile partial sums -> exact mean over the true N points
    loss_dist = jnp.sum(psum.reshape(B, -1), axis=1) / jnp.float32(N)  # (B,)

    # orientation prior term + final means are tiny glue -> plain JAX.
    l_out = rotation[:, :3, 2]
    l_gt = l_gt.astype(jnp.float32)
    cross = jnp.stack([
        l_out[:, 1] * l_gt[:, 2] - l_out[:, 2] * l_gt[:, 1],
        l_out[:, 2] * l_gt[:, 0] - l_out[:, 0] * l_gt[:, 2],
        l_out[:, 0] * l_gt[:, 1] - l_out[:, 1] * l_gt[:, 0]], axis=1)
    loss_z = jnp.sqrt(jnp.sum(cross * cross, axis=1))                  # (B,)

    return jnp.mean(loss_dist) + jnp.float32(weight) * jnp.mean(loss_z)


# ------------------------------------------------------------------ pure-JAX reference
def _reference_loss(x, l_gt, output, weight):
    position = output[:, :3]
    quat = output[:, 3:7]
    R = quaternions_to_rotation_matrices(quat)
    params = output[:, 7:]
    Rt = jnp.transpose(R, (0, 2, 1))
    x_t = -Rt @ position[:, :, None] + Rt @ x
    a1, a2, a3 = params[:, 0:1], params[:, 1:2], params[:, 2:3]
    e1, e2, k = params[:, 3:4], params[:, 4:5], params[:, 5:6]
    b, ca, sa = params[:, 6:7], params[:, 7:8], params[:, 8:9]
    b = b / jnp.maximum(a1, a2)
    eps = 1e-4
    beta = jnp.arctan2(x_t[:, 1, :], x_t[:, 0, :])
    Rv = (ca * jnp.cos(beta) + sa * jnp.sin(beta)) * (x_t[:, 0, :] ** 2 + x_t[:, 1, :] ** 2) ** 0.5
    r = 1 / b - (x_t[:, 2, :] ** 2 + (1 / b - Rv) ** 2) ** 0.5
    gamma = jnp.arctan2(x_t[:, 2, :], 1 / b - Rv)
    X = x_t[:, 0, :] - ca * (Rv - r)
    Y = x_t[:, 1, :] - sa * (Rv - r)
    Z = gamma * 1 / b
    f = k / a3 * Z + 1
    beta2 = ((jnp.abs(X / (jnp.abs(a1 * f) + eps)) ** (2 / e2)
              + jnp.abs(Y / (jnp.abs(a2 * f) + eps)) ** (2 / e2)) ** (e2 / e1)
             + jnp.abs(Z / a3) ** (2 / e1) + eps) ** (-e1 / 2)
    F = jnp.linalg.norm(x_t, axis=1) * (1 - beta2)
    loss_dist = jnp.mean(F ** 2, axis=1)
    l_out = R[:, :3, 2]
    loss_z = jnp.linalg.norm(jnp.cross(l_out, l_gt, axis=1), axis=1)
    return jnp.mean(loss_dist) + weight * jnp.mean(loss_z)


# ------------------------------------------------------------------------------- main
def _make_inputs(key, B, N):
    k1, k2, k3, k4, k5 = jax.random.split(key, 5)
    x = jax.random.normal(k1, (B, 3, N), dtype=jnp.float32)        # point cloud
    l_gt = jax.random.normal(k2, (B, 3), dtype=jnp.float32)        # orientation prior
    # deterministic, well-conditioned synthetic network output (B, 16)
    position = 0.1 * jax.random.normal(k3, (B, 3), dtype=jnp.float32)
    quat = jax.random.normal(k4, (B, 4), dtype=jnp.float32)
    quat = quat / jnp.linalg.norm(quat, axis=1, keepdims=True)
    u = jax.random.uniform(k5, (B, 9), dtype=jnp.float32)
    a_sizes = 0.5 + u[:, 0:3]                  # a1, a2, a3 in [0.5, 1.5]
    e_vals = 0.5 + u[:, 3:5]                   # e1, e2 in [0.5, 1.5]
    k_bend = 0.4 * (u[:, 5:6] - 0.5)           # bending k in [-0.2, 0.2]
    b_bend = 0.05 + 0.25 * u[:, 6:7]           # bending b in [0.05, 0.3]
    alpha = 2.0 * jnp.pi * u[:, 7:8]
    params = jnp.concatenate(
        [a_sizes, e_vals, k_bend, b_bend, jnp.cos(alpha), jnp.sin(alpha)], axis=1)
    output = jnp.concatenate([position, quat, params], axis=1)     # (B, 16)
    return x, l_gt, output


if __name__ == "__main__":
    weight = 0.1
    key = jax.random.PRNGKey(0)
    key_a, key_b = jax.random.split(key)

    # two small configs: single-chunk masked tile, and multi-chunk masked tile
    for k_cfg, (B, N) in ((key_a, (2, 256)), (key_b, (2, 2000))):
        x, l_gt, output = _make_inputs(k_cfg, B, N)
        loss = deformable_superquadric_loss(x, l_gt, output, weight)
        loss = jax.block_until_ready(loss)

        # fidelity check against a pure-JAX reference of the PyTorch forward
        ref = float(_reference_loss(x, l_gt, output, weight))
        assert abs(float(loss) - ref) <= 1e-3 * (1.0 + abs(ref)), (B, N, float(loss), ref)

        # mirror the module's nan/inf guard (host-side)
        if bool(jnp.isnan(loss)) or bool(jnp.isinf(loss)):
            raise ValueError('The loss function is inf or nan.')

    print("KERNEL_OK")
</pallas_src>

<mosaic_0001>
module attributes {stable_mosaic.version = 11 : i64} {
  func.func @_dsq_psum_kernel(%arg0: i32, %arg1: i32, %arg2: memref<1x3x8x128xf32, #tpu.memory_space<vmem>>, %arg3: memref<46xf32, #tpu.memory_space<smem>>, %arg4: memref<1x1x8x128xf32, #tpu.memory_space<vmem>>) attributes {dimension_semantics = [#tpu.dimension_semantics<parallel>, #tpu.dimension_semantics<parallel>], iteration_bounds = array<i64: 2, 1>, scalar_prefetch = 0 : i64, scratch_operands = 0 : i64, tpu.core_type = #tpu.core_type<tc>, window_params = [{transform_indices = @transform_0, window_bounds = array<i64: 1, 3, 8, 128>}, {transform_indices = @transform_1, window_bounds = array<i64: 46>}, {transform_indices = @transform_2, window_bounds = array<i64: 1, 1, 8, 128>}]} {
    %c23_i32 = arith.constant 23 : i32
    %0 = arith.muli %c23_i32, %arg0 : i32
    %c0_i32 = arith.constant 0 : i32
    %1 = arith.addi %0, %c0_i32 : i32
    %2 = arith.index_cast %1 : i32 to index
    %3 = memref.load %arg3[%2] : memref<46xf32, #tpu.memory_space<smem>>
    %c1_i32 = arith.constant 1 : i32
    %4 = arith.addi %0, %c1_i32 : i32
    %5 = arith.index_cast %4 : i32 to index
    %6 = memref.load %arg3[%5] : memref<46xf32, #tpu.memory_space<smem>>
    %c2_i32 = arith.constant 2 : i32
    %7 = arith.addi %0, %c2_i32 : i32
    %8 = arith.index_cast %7 : i32 to index
    %9 = memref.load %arg3[%8] : memref<46xf32, #tpu.memory_space<smem>>
    %c3_i32 = arith.constant 3 : i32
    %10 = arith.addi %0, %c3_i32 : i32
    %11 = arith.index_cast %10 : i32 to index
    %12 = memref.load %arg3[%11] : memref<46xf32, #tpu.memory_space<smem>>
    %c4_i32 = arith.constant 4 : i32
    %13 = arith.addi %0, %c4_i32 : i32
    %14 = arith.index_cast %13 : i32 to index
    %15 = memref.load %arg3[%14] : memref<46xf32, #tpu.memory_space<smem>>
    %c5_i32 = arith.constant 5 : i32
    %16 = arith.addi %0, %c5_i32 : i32
    %17 = arith.index_cast %16 : i32 to index
    %18 = memref.load %arg3[%17] : memref<46xf32, #tpu.memory_space<smem>>
    %c6_i32 = arith.constant 6 : i32
    %19 = arith.addi %0, %c6_i32 : i32
    %20 = arith.index_cast %19 : i32 to index
    %21 = memref.load %arg3[%20] : memref<46xf32, #tpu.memory_space<smem>>
    %c7_i32 = arith.constant 7 : i32
    %22 = arith.addi %0, %c7_i32 : i32
    %23 = arith.index_cast %22 : i32 to index
    %24 = memref.load %arg3[%23] : memref<46xf32, #tpu.memory_space<smem>>
    %c8_i32 = arith.constant 8 : i32
    %25 = arith.addi %0, %c8_i32 : i32
    %26 = arith.index_cast %25 : i32 to index
    %27 = memref.load %arg3[%26] : memref<46xf32, #tpu.memory_space<smem>>
    %c9_i32 = arith.constant 9 : i32
    %28 = arith.addi %0, %c9_i32 : i32
    %c0_i32_0 = arith.constant 0 : i32
    %29 = arith.addi %28, %c0_i32_0 : i32
    %30 = arith.index_cast %29 : i32 to index
    %31 = memref.load %arg3[%30] : memref<46xf32, #tpu.memory_space<smem>>
    %c9_i32_1 = arith.constant 9 : i32
    %32 = arith.addi %0, %c9_i32_1 : i32
    %c1_i32_2 = arith.constant 1 : i32
    %33 = arith.addi %32, %c1_i32_2 : i32
    %34 = arith.index_cast %33 : i32 to index
    %35 = memref.load %arg3[%34] : memref<46xf32, #tpu.memory_space<smem>>
    %c9_i32_3 = arith.constant 9 : i32
    %36 = arith.addi %0, %c9_i32_3 : i32
    %c2_i32_4 = arith.constant 2 : i32
    %37 = arith.addi %36, %c2_i32_4 : i32
    %38 = arith.index_cast %37 : i32 to index
    %39 = memref.load %arg3[%38] : memref<46xf32, #tpu.memory_space<smem>>
    %c12_i32 = arith.constant 12 : i32
    %40 = arith.addi %0, %c12_i32 : i32
    %41 = arith.index_cast %40 : i32 to index
    %42 = memref.load %arg3[%41] : memref<46xf32, #tpu.memory_space<smem>>
    %c13_i32 = arith.constant 13 : i32
    %43 = arith.addi %0, %c13_i32 : i32
    %44 = arith.index_cast %43 : i32 to index
    %45 = memref.load %arg3[%44] : memref<46xf32, #tpu.memory_space<smem>>
    %c14_i32 = arith.constant 14 : i32
    %46 = arith.addi %0, %c14_i32 : i32
    %47 = arith.index_cast %46 : i32 to index
    %48 = memref.load %arg3[%47] : memref<46xf32, #tpu.memory_space<smem>>
    %c15_i32 = arith.constant 15 : i32
    %49 = arith.addi %0, %c15_i32 : i32
    %50 = arith.index_cast %49 : i32 to index
    %51 = memref.load %arg3[%50] : memref<46xf32, #tpu.memory_space<smem>>
    %c16_i32 = arith.constant 16 : i32
    %52 = arith.addi %0, %c16_i32 : i32
    %53 = arith.index_cast %52 : i32 to index
    %54 = memref.load %arg3[%53] : memref<46xf32, #tpu.memory_space<smem>>
    %c17_i32 = arith.constant 17 : i32
    %55 = arith.addi %0, %c17_i32 : i32
    %56 = arith.index_cast %55 : i32 to index
    %57 = memref.load %arg3[%56] : memref<46xf32, #tpu.memory_space<smem>>
    %c18_i32 = arith.constant 18 : i32
    %58 = arith.addi %0, %c18_i32 : i32
    %59 = arith.index_cast %58 : i32 to index
    %60 = memref.load %arg3[%59] : memref<46xf32, #tpu.memory_space<smem>>
    %c19_i32 = arith.constant 19 : i32
    %61 = arith.addi %0, %c19_i32 : i32
    %62 = arith.index_cast %61 : i32 to index
    %63 = memref.load %arg3[%62] : memref<46xf32, #tpu.memory_space<smem>>
    %c20_i32 = arith.constant 20 : i32
    %64 = arith.addi %0, %c20_i32 : i32
    %65 = arith.index_cast %64 : i32 to index
    %66 = memref.load %arg3[%65] : memref<46xf32, #tpu.memory_space<smem>>
    %c21_i32 = arith.constant 21 : i32
    %67 = arith.addi %0, %c21_i32 : i32
    %68 = arith.index_cast %67 : i32 to index
    %69 = memref.load %arg3[%68] : memref<46xf32, #tpu.memory_space<smem>>
    %c22_i32 = arith.constant 22 : i32
    %70 = arith.addi %0, %c22_i32 : i32
    %71 = arith.index_cast %70 : i32 to index
    %72 = memref.load %arg3[%71] : memref<46xf32, #tpu.memory_space<smem>>
    %c1024_i32 = arith.constant 1024 : i32
    %73 = arith.muli %arg1, %c1024_i32 : i32
    %74 = tpu.iota {dimensions = array<i32: 0>} : vector<8x128xi32>
    %c128_i32 = arith.constant 128 : i32
    %75 = vector.broadcast %c128_i32 : i32 to vector<8x128xi32>
    %76 = arith.muli %74, %75 : vector<8x128xi32>
    %77 = tpu.iota {dimensions = array<i32: 1>} : vector<8x128xi32>
    %78 = arith.addi %76, %77 : vector<8x128xi32>
    %cst = arith.constant 0.000000e+00 : f32
    %79 = vector.broadcast %cst : f32 to vector<8x128xf32>
    %cst_5 = arith.constant 9.99999974E-5 : f32
    %c0_i32_6 = arith.constant 0 : i32
    %c8_i32_7 = arith.constant 8 : i32
    %80 = arith.muli %c0_i32_6, %c8_i32_7 : i32
    %81 = tpu.assume_multiple %80, 8 : i32
    %c0 = arith.constant 0 : index
    %c0_8 = arith.constant 0 : index
    %82 = arith.index_cast %81 : i32 to index
    %c0_9 = arith.constant 0 : index
    %83 = vector.load %arg2[%c0, %c0_8, %82, %c0_9] : memref<1x3x8x128xf32, #tpu.memory_space<vmem>>, vector<1x1x8x128xf32>
    %84 = vector.shape_cast %83 : vector<1x1x8x128xf32> to vector<8x128xf32>
    %c0_10 = arith.constant 0 : index
    %c1 = arith.constant 1 : index
    %85 = arith.index_cast %81 : i32 to index
    %c0_11 = arith.constant 0 : index
    %86 = vector.load %arg2[%c0_10, %c1, %85, %c0_11] : memref<1x3x8x128xf32, #tpu.memory_space<vmem>>, vector<1x1x8x128xf32>
    %87 = vector.shape_cast %86 : vector<1x1x8x128xf32> to vector<8x128xf32>
    %c0_12 = arith.constant 0 : index
    %c2 = arith.constant 2 : index
    %88 = arith.index_cast %81 : i32 to index
    %c0_13 = arith.constant 0 : index
    %89 = vector.load %arg2[%c0_12, %c2, %88, %c0_13] : memref<1x3x8x128xf32, #tpu.memory_space<vmem>>, vector<1x1x8x128xf32>
    %90 = vector.shape_cast %89 : vector<1x1x8x128xf32> to vector<8x128xf32>
    %91 = vector.broadcast %3 : f32 to vector<8x128xf32>
    %92 = arith.mulf %91, %84 : vector<8x128xf32>
    %93 = vector.broadcast %6 : f32 to vector<8x128xf32>
    %94 = arith.mulf %93, %87 : vector<8x128xf32>
    %95 = arith.addf %92, %94 : vector<8x128xf32>
    %96 = vector.broadcast %9 : f32 to vector<8x128xf32>
    %97 = arith.mulf %96, %90 : vector<8x128xf32>
    %98 = arith.addf %95, %97 : vector<8x128xf32>
    %99 = vector.broadcast %31 : f32 to vector<8x128xf32>
    %100 = arith.subf %98, %99 : vector<8x128xf32>
    %101 = vector.broadcast %12 : f32 to vector<8x128xf32>
    %102 = arith.mulf %101, %84 : vector<8x128xf32>
    %103 = vector.broadcast %15 : f32 to vector<8x128xf32>
    %104 = arith.mulf %103, %87 : vector<8x128xf32>
    %105 = arith.addf %102, %104 : vector<8x128xf32>
    %106 = vector.broadcast %18 : f32 to vector<8x128xf32>
    %107 = arith.mulf %106, %90 : vector<8x128xf32>
    %108 = arith.addf %105, %107 : vector<8x128xf32>
    %109 = vector.broadcast %35 : f32 to vector<8x128xf32>
    %110 = arith.subf %108, %109 : vector<8x128xf32>
    %111 = vector.broadcast %21 : f32 to vector<8x128xf32>
    %112 = arith.mulf %111, %84 : vector<8x128xf32>
    %113 = vector.broadcast %24 : f32 to vector<8x128xf32>
    %114 = arith.mulf %113, %87 : vector<8x128xf32>
    %115 = arith.addf %112, %114 : vector<8x128xf32>
    %116 = vector.broadcast %27 : f32 to vector<8x128xf32>
    %117 = arith.mulf %116, %90 : vector<8x128xf32>
    %118 = arith.addf %115, %117 : vector<8x128xf32>
    %119 = vector.broadcast %39 : f32 to vector<8x128xf32>
    %120 = arith.subf %118, %119 : vector<8x128xf32>
    %121 = vector.broadcast %48 : f32 to vector<8x128xf32>
    %122 = arith.mulf %121, %100 : vector<8x128xf32>
    %123 = vector.broadcast %51 : f32 to vector<8x128xf32>
    %124 = arith.mulf %123, %110 : vector<8x128xf32>
    %125 = arith.addf %122, %124 : vector<8x128xf32>
    %126 = vector.broadcast %60 : f32 to vector<8x128xf32>
    %127 = arith.subf %126, %125 : vector<8x128xf32>
    %128 = arith.mulf %120, %120 : vector<8x128xf32>
    %129 = arith.mulf %127, %127 : vector<8x128xf32>
    %130 = arith.addf %128, %129 : vector<8x128xf32>
    %131 = math.sqrt %130 : vector<8x128xf32>
    %132 = vector.broadcast %60 : f32 to vector<8x128xf32>
    %133 = arith.subf %132, %131 : vector<8x128xf32>
    %134 = math.absf %120 : vector<8x128xf32>
    %135 = math.absf %127 : vector<8x128xf32>
    %cst_14 = arith.constant 9.99999968E-21 : f32
    %136 = vector.broadcast %cst_14 : f32 to vector<8x128xf32>
    %137 = arith.maximumf %135, %136 : vector<8x128xf32>
    %cst_15 = arith.constant 2.41421366 : f32
    %138 = vector.broadcast %cst_15 : f32 to vector<8x128xf32>
    %139 = arith.mulf %138, %137 : vector<8x128xf32>
    %140 = arith.cmpf ogt, %134, %139 : vector<8x128xf32>
    %cst_16 = arith.constant 0.414213568 : f32
    %141 = vector.broadcast %cst_16 : f32 to vector<8x128xf32>
    %142 = arith.mulf %141, %137 : vector<8x128xf32>
    %143 = arith.cmpf ogt, %134, %142 : vector<8x128xf32>
    %cst_17 = arith.constant dense<true> : vector<8x128xi1>
    %144 = arith.xori %140, %cst_17 : vector<8x128xi1>
    %145 = arith.andi %143, %144 : vector<8x128xi1>
    %cst_18 = arith.constant 0.000000e+00 : f32
    %146 = vector.broadcast %cst_18 : f32 to vector<8x128xf32>
    %147 = arith.subf %146, %137 : vector<8x128xf32>
    %148 = arith.subf %134, %137 : vector<8x128xf32>
    %149 = arith.select %145, %148, %134 : vector<8x128xi1>, vector<8x128xf32>
    %150 = arith.select %140, %147, %149 : vector<8x128xi1>, vector<8x128xf32>
    %151 = arith.addf %134, %137 : vector<8x128xf32>
    %152 = arith.select %145, %151, %137 : vector<8x128xi1>, vector<8x128xf32>
    %153 = arith.select %140, %134, %152 : vector<8x128xi1>, vector<8x128xf32>
    %154 = tpu.reciprocal %153 {approx = true} : vector<8x128xf32> -> vector<8x128xf32>
    %155 = arith.mulf %153, %154 : vector<8x128xf32>
    %cst_19 = arith.constant 2.000000e+00 : f32
    %156 = vector.broadcast %cst_19 : f32 to vector<8x128xf32>
    %157 = arith.subf %156, %155 : vector<8x128xf32>
    %158 = arith.mulf %154, %157 : vector<8x128xf32>
    %159 = arith.mulf %150, %158 : vector<8x128xf32>
    %cst_20 = arith.constant 0.785398185 : f32
    %cst_21 = arith.constant 0.000000e+00 : f32
    %160 = vector.broadcast %cst_20 : f32 to vector<8x128xf32>
    %161 = vector.broadcast %cst_21 : f32 to vector<8x128xf32>
    %162 = arith.select %145, %160, %161 : vector<8x128xi1>, vector<8x128xf32>
    %cst_22 = arith.constant 1.57079637 : f32
    %163 = vector.broadcast %cst_22 : f32 to vector<8x128xf32>
    %164 = arith.select %140, %163, %162 : vector<8x128xi1>, vector<8x128xf32>
    %165 = arith.mulf %159, %159 : vector<8x128xf32>
    %cst_23 = arith.constant 0.0805374458 : f32
    %166 = vector.broadcast %cst_23 : f32 to vector<8x128xf32>
    %167 = arith.mulf %166, %165 : vector<8x128xf32>
    %cst_24 = arith.constant 0.138776854 : f32
    %168 = vector.broadcast %cst_24 : f32 to vector<8x128xf32>
    %169 = arith.subf %167, %168 : vector<8x128xf32>
    %170 = arith.mulf %169, %165 : vector<8x128xf32>
    %cst_25 = arith.constant 0.199777111 : f32
    %171 = vector.broadcast %cst_25 : f32 to vector<8x128xf32>
    %172 = arith.addf %170, %171 : vector<8x128xf32>
    %173 = arith.mulf %172, %165 : vector<8x128xf32>
    %cst_26 = arith.constant 0.333329499 : f32
    %174 = vector.broadcast %cst_26 : f32 to vector<8x128xf32>
    %175 = arith.subf %173, %174 : vector<8x128xf32>
    %176 = arith.addf %164, %159 : vector<8x128xf32>
    %177 = arith.mulf %159, %165 : vector<8x128xf32>
    %178 = arith.mulf %177, %175 : vector<8x128xf32>
    %179 = arith.addf %176, %178 : vector<8x128xf32>
    %cst_27 = arith.constant 0.000000e+00 : f32
    %180 = vector.broadcast %cst_27 : f32 to vector<8x128xf32>
    %181 = arith.cmpf olt, %120, %180 : vector<8x128xf32>
    %cst_28 = arith.constant 0.000000e+00 : f32
    %182 = vector.broadcast %cst_28 : f32 to vector<8x128xf32>
    %183 = arith.subf %182, %179 : vector<8x128xf32>
    %184 = arith.select %181, %183, %179 : vector<8x128xi1>, vector<8x128xf32>
    %cst_29 = arith.constant 0.000000e+00 : f32
    %185 = vector.broadcast %cst_29 : f32 to vector<8x128xf32>
    %186 = arith.cmpf ogt, %127, %185 : vector<8x128xf32>
    %cst_30 = arith.constant 0.000000e+00 : f32
    %187 = vector.broadcast %cst_30 : f32 to vector<8x128xf32>
    %188 = arith.cmpf olt, %127, %187 : vector<8x128xf32>
    %cst_31 = arith.constant 0.000000e+00 : f32
    %189 = vector.broadcast %cst_31 : f32 to vector<8x128xf32>
    %190 = arith.cmpf oge, %120, %189 : vector<8x128xf32>
    %cst_32 = arith.constant 3.14159274 : f32
    %191 = vector.broadcast %cst_32 : f32 to vector<8x128xf32>
    %192 = arith.subf %191, %179 : vector<8x128xf32>
    %cst_33 = arith.constant 3.14159274 : f32
    %193 = vector.broadcast %cst_33 : f32 to vector<8x128xf32>
    %194 = arith.subf %179, %193 : vector<8x128xf32>
    %195 = arith.select %190, %192, %194 : vector<8x128xi1>, vector<8x128xf32>
    %cst_34 = arith.constant 0.000000e+00 : f32
    %196 = vector.broadcast %cst_34 : f32 to vector<8x128xf32>
    %197 = arith.cmpf ogt, %120, %196 : vector<8x128xf32>
    %cst_35 = arith.constant 0.000000e+00 : f32
    %198 = vector.broadcast %cst_35 : f32 to vector<8x128xf32>
    %199 = arith.cmpf olt, %120, %198 : vector<8x128xf32>
    %cst_36 = arith.constant 0.000000e+00 : f32
    %cst_37 = arith.constant 1.57079637 : f32
    %200 = arith.subf %cst_36, %cst_37 : f32
    %cst_38 = arith.constant 0.000000e+00 : f32
    %201 = vector.broadcast %200 : f32 to vector<8x128xf32>
    %202 = vector.broadcast %cst_38 : f32 to vector<8x128xf32>
    %203 = arith.select %199, %201, %202 : vector<8x128xi1>, vector<8x128xf32>
    %cst_39 = arith.constant 1.57079637 : f32
    %204 = vector.broadcast %cst_39 : f32 to vector<8x128xf32>
    %205 = arith.select %197, %204, %203 : vector<8x128xi1>, vector<8x128xf32>
    %206 = arith.select %188, %195, %205 : vector<8x128xi1>, vector<8x128xf32>
    %207 = arith.select %186, %184, %206 : vector<8x128xi1>, vector<8x128xf32>
    %208 = arith.subf %125, %133 : vector<8x128xf32>
    %209 = vector.broadcast %48 : f32 to vector<8x128xf32>
    %210 = arith.mulf %209, %208 : vector<8x128xf32>
    %211 = arith.subf %100, %210 : vector<8x128xf32>
    %212 = arith.subf %125, %133 : vector<8x128xf32>
    %213 = vector.broadcast %51 : f32 to vector<8x128xf32>
    %214 = arith.mulf %213, %212 : vector<8x128xf32>
    %215 = arith.subf %110, %214 : vector<8x128xf32>
    %216 = vector.broadcast %60 : f32 to vector<8x128xf32>
    %217 = arith.mulf %207, %216 : vector<8x128xf32>
    %218 = vector.broadcast %57 : f32 to vector<8x128xf32>
    %219 = arith.mulf %218, %217 : vector<8x128xf32>
    %cst_40 = arith.constant 1.000000e+00 : f32
    %220 = vector.broadcast %cst_40 : f32 to vector<8x128xf32>
    %221 = arith.addf %219, %220 : vector<8x128xf32>
    %222 = vector.broadcast %42 : f32 to vector<8x128xf32>
    %223 = arith.mulf %222, %221 : vector<8x128xf32>
    %224 = math.absf %223 : vector<8x128xf32>
    %225 = vector.broadcast %cst_5 : f32 to vector<8x128xf32>
    %226 = arith.addf %224, %225 : vector<8x128xf32>
    %227 = vector.broadcast %45 : f32 to vector<8x128xf32>
    %228 = arith.mulf %227, %221 : vector<8x128xf32>
    %229 = math.absf %228 : vector<8x128xf32>
    %230 = vector.broadcast %cst_5 : f32 to vector<8x128xf32>
    %231 = arith.addf %229, %230 : vector<8x128xf32>
    %232 = arith.mulf %226, %231 : vector<8x128xf32>
    %233 = tpu.reciprocal %232 {approx = true} : vector<8x128xf32> -> vector<8x128xf32>
    %234 = arith.mulf %232, %233 : vector<8x128xf32>
    %cst_41 = arith.constant 2.000000e+00 : f32
    %235 = vector.broadcast %cst_41 : f32 to vector<8x128xf32>
    %236 = arith.subf %235, %234 : vector<8x128xf32>
    %237 = arith.mulf %233, %236 : vector<8x128xf32>
    %238 = math.absf %211 : vector<8x128xf32>
    %239 = arith.mulf %231, %237 : vector<8x128xf32>
    %240 = arith.mulf %238, %239 : vector<8x128xf32>
    %241 = math.log %240 : vector<8x128xf32>
    %242 = vector.broadcast %63 : f32 to vector<8x128xf32>
    %243 = arith.mulf %242, %241 : vector<8x128xf32>
    %244 = math.exp %243 : vector<8x128xf32>
    %245 = math.absf %215 : vector<8x128xf32>
    %246 = arith.mulf %226, %237 : vector<8x128xf32>
    %247 = arith.mulf %245, %246 : vector<8x128xf32>
    %248 = math.log %247 : vector<8x128xf32>
    %249 = vector.broadcast %63 : f32 to vector<8x128xf32>
    %250 = arith.mulf %249, %248 : vector<8x128xf32>
    %251 = math.exp %250 : vector<8x128xf32>
    %252 = vector.broadcast %54 : f32 to vector<8x128xf32>
    %253 = arith.mulf %217, %252 : vector<8x128xf32>
    %254 = math.absf %253 : vector<8x128xf32>
    %255 = math.log %254 : vector<8x128xf32>
    %256 = vector.broadcast %66 : f32 to vector<8x128xf32>
    %257 = arith.mulf %256, %255 : vector<8x128xf32>
    %258 = math.exp %257 : vector<8x128xf32>
    %259 = arith.addf %244, %251 : vector<8x128xf32>
    %260 = math.log %259 : vector<8x128xf32>
    %261 = vector.broadcast %69 : f32 to vector<8x128xf32>
    %262 = arith.mulf %261, %260 : vector<8x128xf32>
    %263 = math.exp %262 : vector<8x128xf32>
    %264 = arith.addf %263, %258 : vector<8x128xf32>
    %265 = vector.broadcast %cst_5 : f32 to vector<8x128xf32>
    %266 = arith.addf %264, %265 : vector<8x128xf32>
    %267 = math.log %266 : vector<8x128xf32>
    %268 = vector.broadcast %72 : f32 to vector<8x128xf32>
    %269 = arith.mulf %268, %267 : vector<8x128xf32>
    %270 = math.exp %269 : vector<8x128xf32>
    %cst_42 = arith.constant 1.000000e+00 : f32
    %271 = vector.broadcast %cst_42 : f32 to vector<8x128xf32>
    %272 = arith.subf %271, %270 : vector<8x128xf32>
    %273 = arith.mulf %100, %100 : vector<8x128xf32>
    %274 = arith.mulf %110, %110 : vector<8x128xf32>
    %275 = arith.addf %273, %274 : vector<8x128xf32>
    %276 = arith.mulf %120, %120 : vector<8x128xf32>
    %277 = arith.addf %275, %276 : vector<8x128xf32>
    %278 = arith.mulf %272, %272 : vector<8x128xf32>
    %279 = arith.mulf %277, %278 : vector<8x128xf32>
    %c1024_i32_43 = arith.constant 1024 : i32
    %280 = arith.muli %c0_i32_6, %c1024_i32_43 : i32
    %281 = arith.addi %73, %280 : i32
    %282 = vector.broadcast %281 : i32 to vector<8x128xi32>
    %283 = arith.addi %282, %78 : vector<8x128xi32>
    %c256_i32 = arith.constant 256 : i32
    %284 = vector.broadcast %c256_i32 : i32 to vector<8x128xi32>
    %285 = arith.cmpi slt, %283, %284 : vector<8x128xi32>
    %cst_44 = arith.constant 0.000000e+00 : f32
    %286 = vector.broadcast %cst_44 : f32 to vector<8x128xf32>
    %287 = arith.select %285, %279, %286 : vector<8x128xi1>, vector<8x128xf32>
    %288 = arith.addf %79, %287 : vector<8x128xf32>
    %c1_i32_45 = arith.constant 1 : i32
    %c0_46 = arith.constant 0 : index
    %c0_47 = arith.constant 0 : index
    %c0_48 = arith.constant 0 : index
    %c0_49 = arith.constant 0 : index
    %289 = vector.load %arg4[%c0_46, %c0_47, %c0_48, %c0_49] : memref<1x1x8x128xf32, #tpu.memory_space<vmem>>, vector<1x1x8x128xf32>
    %290 = vector.shape_cast %289 : vector<1x1x8x128xf32> to vector<8x128xf32>
    %291 = vector.shape_cast %288 : vector<8x128xf32> to vector<1x1x8x128xf32>
    tpu.vector_store %arg4[%c0_46, %c0_47, %c0_48, %c0_49], %291 {strides = array<i32>} : memref<1x1x8x128xf32, #tpu.memory_space<vmem>>, vector<1x1x8x128xf32>,
    return
  }
  func.func @transform_0(%arg0: i32, %arg1: i32) -> (i32, i32, i32, i32) {
    %c0_i32 = arith.constant 0 : i32
    %c0_i32_0 = arith.constant 0 : i32
    %c0_i32_1 = arith.constant 0 : i32
    return %arg0, %c0_i32, %arg1, %c0_i32_0 : i32, i32, i32, i32
  }
  func.func @transform_1(%arg0: i32, %arg1: i32) -> i32 {
    %c0_i32 = arith.constant 0 : i32
    %c0_i32_0 = arith.constant 0 : i32
    return %c0_i32 : i32
  }
  func.func @transform_2(%arg0: i32, %arg1: i32) -> (i32, i32, i32, i32) {
    %c0_i32 = arith.constant 0 : i32
    %c0_i32_0 = arith.constant 0 : i32
    %c0_i32_1 = arith.constant 0 : i32
    return %arg0, %arg1, %c0_i32, %c0_i32_0 : i32, i32, i32, i32
  }
}

</mosaic_0001>

<llo_original>
// kernel: tpu_custom_call.1
$region0: #{tpu_custom_call.1}
  #allocation0 [shape = 'u32[]', space=smem, size = 0x4, offset = 0x4, fixed_abs, tag = 'smem constant byte address 0x4 - core index']
  #allocation1 [shape = 'u32[144,128]{1,0:T(1,128)}', space=vmem, size = 0x12000, scoped, tag = 'internal scratch']
  %s0 = inlined_call_operand.hbm [shape: f32[2,3,8,128], index: 0, kind: input, shape index: {}]
  %s1 = inlined_call_operand.vmem [shape: f32[46], index: 1, kind: input, shape index: {}]
  %s2 = inlined_call_operand.hbm [shape: f32[2,1,8,128], index: 2, kind: output, shape index: {}]
  %s3 = sld [smem:[#allocation0]]
  $region49: #{tpu_custom_call.1} parent=0
    _
  %s5 = ssub.s32 1, %s3
  %s6 = scalar_select 0, %s5, %s3
  $region1: #{tpu_custom_call.1} parent=0
    #allocation2 [shape = 'u8[24576]{0}', space=vmem, size = 0x6000, scoped, tag = 'input window, operand 0']
    #allocation3 [shape = 's32[2]{0}', space=sflag, size = 0x8, scoped, tag = 'scoped memory for tpu_custom_call.1']
    #allocation4 [shape = 's32[2]{0}', space=sflag, size = 0x8, scoped, tag = 'scoped memory for tpu_custom_call.1']
    #allocation5 [shape = 's32[2]{0}', space=sflag, size = 0x8, scoped, tag = 'scoped memory for tpu_custom_call.1']
    #allocation6 [shape = 'u8[512]{0}', space=smem, size = 0x200, scoped, tag = 'input window, operand 1, single buffered']
    #allocation7 [shape = 'u8[8192]{0}', space=vmem, size = 0x2000, scoped, tag = 'output window, operand 0']
    %7 = vsyncpa [#allocation3], 0
    %s8 = scalar_lea.sflag [#allocation3], 1
    %9 = vsyncpa %s8, 0
    %10 = vsyncpa [#allocation5], 0
    %11 = vsyncpa [#allocation4], 0
    %s12 = scalar_lea.sflag [#allocation4], 1
    %13 = vsyncpa %s12, 0
    loop: start=0, step=1, limit=4
    $region2: #{tpu_custom_call.1} parent=1 // loop_pre_header
      _
    $region3: #{tpu_custom_call.1} parent=1 // loop_header
      %s15 = sphi 0, %s19
      %p16 = scmp.ge.s32.totalorder %s15, 4
      %s22 = sphi 0, %s34
      %s23 = sphi 0, %s30
      %s24 = sphi 0, %s22
      %s25 = sphi 0, %s23
      %s26 = sphi 0, %s24
      %s27 = sphi 0, %s25
      %s39 = sphi 0, %s41
      %s42 = sphi 0, %s39
      %s43 = sphi 0, %s42
      %s59 = sphi 0, %s43
      %s63 = sphi 0, %s63
      %s65 = sphi 0, %s63
      %s66 = sphi 0, %s65
      %s80 = sphi 0, %s66
      %s88 = sphi 0, %s90
      %s91 = sphi 0, %s88
      %s92 = sphi 0, %s91
      %s108 = sphi 0, %s92
    $region4: #{tpu_custom_call.1} parent=1 // loop_header_branch
      %18 = sbr.rel (%p16) target = $region8
    $region5: #{tpu_custom_call.1} parent=1 // loop_body
      %s20 = ssub.s32 %s15, 1
      %s21 = ssub.s32 %s15, 2
      %s28 = sadd.s32 1, %s23
      %p29 = scmp.ge.s32.totalorder %s28, 1
      %s30 = scalar_select %p29, 0, %s28
      %s31 = sadd.s32 1, %s22
      %s32 = scalar_select %p29, %s31, %s22
      %p33 = scmp.ge.s32.totalorder %s32, 2
      %s34 = scalar_select %p33, 0, %s32
      %s35 = ssub.s32 %s22, %s34
      %s36 = ssub.s32 %s23, %s30
      %s37 = sor.u32 %s35, %s36
      %p38 = scmp.eq.s32.totalorder %s37, 0
      %s40 = sadd.s32 %s39, 1
      %s41 = scalar_select %p38, %s39, %s40
      %p44 = pneg %p38
      %p45 = scmp.eq.s32.totalorder %s15, 1
      %p46 = por %p44, %p45
      %p47 = scmp.ne.s32.totalorder %s39, %s42
      %p48 = scmp.eq.s32.totalorder %s15, 0
      %p49 = por %p47, %p48
      %p50 = scmp.ne.s32.totalorder %s39, %s42
      %p51 = scmp.eq.s32.totalorder %s20, 1
      %p52 = por %p50, %p51
      %p53 = scmp.ne.s32.totalorder %s42, %s43
      %p54 = scmp.eq.s32.totalorder %s20, 0
      %p55 = por %p53, %p54
      %p56 = scmp.ne.s32.totalorder %s42, %s43
      %p57 = scmp.eq.s32.totalorder %s21, 1
      %p58 = por %p56, %p57
      %p60 = scmp.ne.s32.totalorder %s43, %s59
      %p61 = scmp.eq.s32.totalorder %s21, 0
      %p62 = por %p60, %p61
      %s64 = sadd.s32 %s63, 1
      %p67 = scmp.eq.s32.totalorder %s15, 1
      %p68 = scmp.ne.s32.totalorder %s63, %s65
      %p69 = scmp.eq.s32.totalorder %s15, 0
      %p70 = por %p68, %p69
      %p71 = scmp.ne.s32.totalorder %s63, %s65
      %p72 = scmp.eq.s32.totalorder %s20, 1
      %p73 = por %p71, %p72
      %p74 = scmp.ne.s32.totalorder %s65, %s66
      %p75 = scmp.eq.s32.totalorder %s20, 0
      %p76 = por %p74, %p75
      %p77 = scmp.ne.s32.totalorder %s65, %s66
      %p78 = scmp.eq.s32.totalorder %s21, 1
      %p79 = por %p77, %p78
      %p81 = scmp.ne.s32.totalorder %s66, %s80
      %p82 = scmp.eq.s32.totalorder %s21, 0
      %p83 = por %p81, %p82
      %s84 = ssub.s32 %s22, %s34
      %s85 = ssub.s32 %s23, %s30
      %s86 = sor.u32 %s84, %s85
      %p87 = scmp.eq.s32.totalorder %s86, 0
      %s89 = sadd.s32 %s88, 1
      %s90 = scalar_select %p87, %s88, %s89
      %p93 = pneg %p87
      %p94 = scmp.eq.s32.totalorder %s15, 1
      %p95 = por %p93, %p94
      %p96 = scmp.ne.s32.totalorder %s88, %s91
      %p97 = scmp.eq.s32.totalorder %s15, 0
      %p98 = por %p96, %p97
      %p99 = scmp.ne.s32.totalorder %s88, %s91
      %p100 = scmp.eq.s32.totalorder %s20, 1
      %p101 = por %p99, %p100
      %p102 = scmp.ne.s32.totalorder %s91, %s92
      %p103 = scmp.eq.s32.totalorder %s20, 0
      %p104 = por %p102, %p103
      %p105 = scmp.ne.s32.totalorder %s91, %s92
      %p106 = scmp.eq.s32.totalorder %s21, 1
      %p107 = por %p105, %p106
      %p109 = scmp.ne.s32.totalorder %s92, %s108
      %p110 = scmp.eq.s32.totalorder %s21, 0
      %p111 = por %p109, %p110
      %p112 = scmp.le.s32.totalorder 1, %s15
      %p113 = scmp.lt.s32.totalorder %s15, 3
      %p114 = pnand %p112, %p113
      %p115 = pneg %p114
      // Predicated region
      $region9: #{tpu_custom_call.1} parent=5 // pred_check
        _
      $region10: #{tpu_custom_call.1} parent=5 // pred_check_branch
        %117 = sbr.rel (%p114) target = $region12
      $region11: #{tpu_custom_call.1} parent=5 // pred_region
        %s118 = ssub.s32 %s15, 1
        // Predicated region
        $region13: #{tpu_custom_call.1} parent=11 // pred_check
          %p119 = pneg %p76
        $region14: #{tpu_custom_call.1} parent=11 // pred_check_branch
          %121 = sbr.rel (%p119) target = $region16
        $region15: #{tpu_custom_call.1} parent=11 // pred_region
          %s123 = ssub.s32 16, 16
          %124 = vsyncadd [#allocation5], %s123
          %s126 = sshll.u32 %s1, 4
          %s127 = int_to_ptr.vmem [resolvable:$true] %s126
          %129 = dma.vmem_to_smem %s127, 16, [#allocation6], [#allocation5]
        $region16: #{tpu_custom_call.1} parent=11 // pred_fallthru
          _
      $region12: #{tpu_custom_call.1} parent=5 // pred_fallthru
        _
      %p130 = scmp.lt.s32.totalorder %s15, 2
      // Predicated region
      $region17: #{tpu_custom_call.1} parent=5 // pred_check
        %p131 = pneg %p130
      $region18: #{tpu_custom_call.1} parent=5 // pred_check_branch
        %133 = sbr.rel (%p131) target = $region20
      $region19: #{tpu_custom_call.1} parent=5 // pred_region
        // Predicated region
        $region21: #{tpu_custom_call.1} parent=19 // pred_check
          %p134 = pneg %p49
        $region22: #{tpu_custom_call.1} parent=19 // pred_check_branch
          %136 = sbr.rel (%p134) target = $region24
        $region23: #{tpu_custom_call.1} parent=19 // pred_region
          %s137 = sand.u32 %s39, 1
          %s138 = scalar_lea.sflag [#allocation3], %s137
          %s139 = sand.u32 %s39, 1
          %s140 = smul.addr %s139, 24
          %s141 = scalar_lea.vmem [#allocation2], %s140
          %s143 = ssub.s32 384, 384
          %144 = vsyncadd %s138, %s143
          %s145 = smul.addr %s22, 3
          %s146 = sadd.s32 %s23, %s145
          %s147 = smul.addr %s146, 128
          %s148 = scalar_lea.hbm %s0, %s147
          %s149 = sshll.u32 %s141, 4
          %s150 = int_to_ptr.vmem [resolvable:$true] %s149
          %155 = dma.hbm_to_vmem [thread:$0]  %s148, 384, %s150, %s138, 128, 128, 8
        $region24: #{tpu_custom_call.1} parent=19 // pred_fallthru
          _
      $region20: #{tpu_custom_call.1} parent=5 // pred_fallthru
        _
      %p156 = scmp.le.s32.totalorder 1, %s15
      %p157 = scmp.lt.s32.totalorder %s15, 3
      %p158 = pnand %p156, %p157
      %p159 = pneg %p158
      // Predicated region
      $region25: #{tpu_custom_call.1} parent=5 // pred_check
        _
      $region26: #{tpu_custom_call.1} parent=5 // pred_check_branch
        %161 = sbr.rel (%p158) target = $region28
      $region27: #{tpu_custom_call.1} parent=5 // pred_region
        %s162 = ssub.s32 %s15, 1
        %s163 = sand.u32 %s42, 1
        %s164 = scalar_lea.sflag [#allocation3], %s163
        %s165 = sand.u32 %s42, 1
        %s166 = smul.addr %s165, 24
        %s167 = scalar_lea.vmem [#allocation2], %s166
        // Predicated region
        $region29: #{tpu_custom_call.1} parent=27 // pred_check
          %p168 = pneg %p55
        $region30: #{tpu_custom_call.1} parent=27 // pred_check_branch
          %170 = sbr.rel (%p168) target = $region32
        $region31: #{tpu_custom_call.1} parent=27 // pred_region
          %171 = dma.done %s164, 384
        $region32: #{tpu_custom_call.1} parent=27 // pred_fallthru
          _
        // Predicated region
        $region33: #{tpu_custom_call.1} parent=27 // pred_check
          %p172 = pneg %p76
        $region34: #{tpu_custom_call.1} parent=27 // pred_check_branch
          %174 = sbr.rel (%p172) target = $region36
        $region35: #{tpu_custom_call.1} parent=27 // pred_region
          %175 = dma.done [#allocation5], 16
        $region36: #{tpu_custom_call.1} parent=27 // pred_fallthru
          _
        %176 = sfence
        %s177 = sand.u32 %s42, 1
        %s178 = scalar_lea.sflag [#allocation3], %s177
        %s179 = sand.u32 %s42, 1
        %s180 = smul.addr %s179, 24
        %s181 = scalar_lea.vmem [#allocation2], %s180
        %p182 = pneg %p55
        %p183 = pneg %p52
        %p184 = pneg %p76
        %p185 = pneg %p73
        %p186 = pneg %p104
        %p187 = pneg %p101
        %s188 = sand.u32 %s91, 1
        %s189 = scalar_lea.sflag [#allocation4], %s188
        %s190 = sand.u32 %s91, 1
        %s191 = smul.addr %s190, 8
        %s192 = scalar_lea.vmem [#allocation7], %s191
        %s193 = smul.u32 %s24, 23
        %s194 = sld [smem:[#allocation6 + %s193]]
        %s195 = sadd.s32 %s193, 1
        %s196 = sld [smem:[#allocation6 + %s195]]
        %s197 = sadd.s32 %s193, 2
        %s198 = sld [smem:[#allocation6 + %s197]]
        %s199 = sadd.s32 %s193, 3
        %s200 = sld [smem:[#allocation6 + %s199]]
        %s201 = sadd.s32 %s193, 4
        %s202 = sld [smem:[#allocation6 + %s201]]
        %s203 = sadd.s32 %s193, 5
        %s204 = sld [smem:[#allocation6 + %s203]]
        %s205 = sadd.s32 %s193, 6
        %s206 = sld [smem:[#allocation6 + %s205]]
        %s207 = sadd.s32 %s193, 7
        %s208 = sld [smem:[#allocation6 + %s207]]
        %s209 = sadd.s32 %s193, 8
        %s210 = sld [smem:[#allocation6 + %s209]]
        %s211 = sadd.s32 %s193, 9
        %s212 = sld [smem:[#allocation6 + %s211]]
        %s213 = sadd.s32 %s193, 10
        %s214 = sld [smem:[#allocation6 + %s213]]
        %s215 = sadd.s32 %s193, 11
        %s216 = sld [smem:[#allocation6 + %s215]]
        %s217 = sadd.s32 %s193, 12
        %s218 = sld [smem:[#allocation6 + %s217]]
        %s219 = sadd.s32 %s193, 13
        %s220 = sld [smem:[#allocation6 + %s219]]
        %s221 = sadd.s32 %s193, 14
        %s222 = sld [smem:[#allocation6 + %s221]]
        %s223 = sadd.s32 %s193, 15
        %s224 = sld [smem:[#allocation6 + %s223]]
        %s225 = sadd.s32 %s193, 16
        %s226 = sld [smem:[#allocation6 + %s225]]
        %s227 = sadd.s32 %s193, 17
        %s228 = sld [smem:[#allocation6 + %s227]]
        %s229 = sadd.s32 %s193, 18
        %s230 = sld [smem:[#allocation6 + %s229]]
        %s231 = sadd.s32 %s193, 19
        %s232 = sld [smem:[#allocation6 + %s231]]
        %s233 = sadd.s32 %s193, 20
        %s234 = sld [smem:[#allocation6 + %s233]]
        %s235 = sadd.s32 %s193, 21
        %s236 = sld [smem:[#allocation6 + %s235]]
        %s237 = sadd.s32 %s193, 22
        %s238 = sld [smem:[#allocation6 + %s237]]
        %s239 = smul.u32 %s25, 1024
        %v240 = vlaneseq
        %v241 = vshrl.u32 %v240, 7
        %v242 = vmul.u32 %v241, 128
        %v243 = vlaneseq
        %v244 = vand.u32 %v243, 127
        %v245 = vadd.s32 %v242, %v244
        %v246 = vld [vmem:[%s167] sm:$0xff]
        %s247 = sadd.s32 0, 8
        %s248 = scalar_lea.vmem %s167, %s247 [#allocation2]
        %v249 = vld [vmem:[%s248] sm:$0xff]
        %s250 = sadd.s32 0, 16
        %s251 = scalar_lea.vmem %s167, %s250 [#allocation2]
        %v252 = vld [vmem:[%s251] sm:$0xff]
        %v253 = vstv %s194
        %v254 = vmul.f32 %v253, %v246
        %v255 = vstv %s196
        %v256 = vmul.f32 %v255, %v249
        %v257 = vadd.f32 %v254, %v256
        %v258 = vstv %s198
        %v259 = vmul.f32 %v258, %v252
        %v260 = vadd.f32 %v257, %v259
        %v261 = vstv %s212
        %v262 = vsub.f32 %v260, %v261
        %v263 = vstv %s200
        %v264 = vmul.f32 %v263, %v246
        %v265 = vstv %s202
        %v266 = vmul.f32 %v265, %v249
        %v267 = vadd.f32 %v264, %v266
        %v268 = vstv %s204
        %v269 = vmul.f32 %v268, %v252
        %v270 = vadd.f32 %v267, %v269
        %v271 = vstv %s214
        %v272 = vsub.f32 %v270, %v271
        %v273 = vstv %s206
        %v274 = vmul.f32 %v273, %v246
        %v275 = vstv %s208
        %v276 = vmul.f32 %v275, %v249
        %v277 = vadd.f32 %v274, %v276
        %v278 = vstv %s210
        %v279 = vmul.f32 %v278, %v252
        %v280 = vadd.f32 %v277, %v279
        %v281 = vstv %s216
        %v282 = vsub.f32 %v280, %v281
        %v283 = vstv %s222
        %v284 = vmul.f32 %v283, %v262
        %v285 = vstv %s224
        %v286 = vmul.f32 %v285, %v272
        %v287 = vadd.f32 %v284, %v286
        %v288 = vstv %s230
        %v289 = vsub.f32 %v288, %v287
        %v290 = vmul.f32 %v282, %v282
        %v291 = vmul.f32 %v289, %v289
        %v292 = vadd.f32 %v290, %v291
        %v293 = vrsqrt.pop %v292
        %v294 = vmul.f32 %v292, %v293
        %vm295 = vcmp.eq.f32.partialorder %v292, inf
        %v296 = vsel %vm295, %v292, %v294
        %vm297 = vcmp.eq.f32.partialorder %v292, 0.0
        %v298 = vand.u32 %v292, 2147483648
        %v299 = vsel %vm297, %v298, %v296
        %v300 = vsub.f32 %v288, %v299
        %v301 = vand.u32 2147483647, %v282
        %v302 = vand.u32 2147483647, %v289
        %v303 = vmax.f32 %v302, 1e-20
        %v304 = vmul.f32 %v303, 2.4142137
        %vm305 = vcmp.gt.f32.partialorder %v301, %v304
        %v306 = vmul.f32 %v303, 0.41421357
        %vm307 = vcmp.gt.f32.partialorder %v301, %v306
        %vm308 = vmxor %vm305, 1
        %vm309 = vmand %vm307, %vm308
        %v310 = vsub.f32 0.0, %v303
        %v311 = vsub.f32 %v301, %v303
        %v312 = vsel %vm309, %v311, %v301
        %v313 = vsel %vm305, %v310, %v312
        %v314 = vadd.f32 %v301, %v303
        %v315 = vsel %vm309, %v314, %v303
        %v316 = vsel %vm305, %v301, %v315
        %v317 = vrcp.pop %v316
        %v318 = vmul.f32 %v316, %v317
        %v319 = vsub.f32 2.0, %v318
        %v320 = vmul.f32 %v317, %v319
        %v321 = vmul.f32 %v313, %v320
        %v322 = vsel %vm309, 0.7853982, 0.0
        %v323 = vsel %vm305, 1.5707964, %v322
        %v324 = vmul.f32 %v321, %v321
        %v325 = vmul.f32 %v324, 0.080537446
        %v326 = vsub.f32 %v325, 0.13877685
        %v327 = vmul.f32 %v326, %v324
        %v328 = vadd.f32 %v327, 0.19977711
        %v329 = vmul.f32 %v328, %v324
        %v330 = vsub.f32 %v329, 0.3333295
        %v331 = vadd.f32 %v323, %v321
        %v332 = vmul.f32 %v321, %v324
        %v333 = vmul.f32 %v332, %v330
        %v334 = vadd.f32 %v331, %v333
        %vm335 = vcmp.lt.f32.partialorder %v282, 0.0
        %v336 = vsub.f32 0.0, %v334
        %v337 = vsel %vm335, %v336, %v334
        %vm338 = vcmp.gt.f32.partialorder %v289, 0.0
        %vm339 = vcmp.lt.f32.partialorder %v289, 0.0
        %vm340 = vcmp.ge.f32.partialorder %v282, 0.0
        %v341 = vsub.f32 3.1415927, %v334
        %v342 = vsub.f32 %v334, 3.1415927
        %v343 = vsel %vm340, %v341, %v342
        %vm344 = vcmp.gt.f32.partialorder %v282, 0.0
        %v345 = vsel %vm335, -1.5707964, 0.0
        %v346 = vsel %vm344, 1.5707964, %v345
        %v347 = vsel %vm339, %v343, %v346
        %v348 = vsel %vm338, %v337, %v347
        %v349 = vsub.f32 %v287, %v300
        %v350 = vmul.f32 %v283, %v349
        %v351 = vsub.f32 %v262, %v350
        %v352 = vmul.f32 %v285, %v349
        %v353 = vsub.f32 %v272, %v352
        %v354 = vmul.f32 %v348, %v288
        %v355 = vstv %s228
        %v356 = vmul.f32 %v355, %v354
        %v357 = vadd.f32 %v356, 1.0
        %v358 = vstv %s218
        %v359 = vmul.f32 %v358, %v357
        %v360 = vand.u32 2147483647, %v359
        %v361 = vadd.f32 %v360, 0.0001
        %v362 = vstv %s220
        %v363 = vmul.f32 %v362, %v357
        %v364 = vand.u32 2147483647, %v363
        %v365 = vadd.f32 %v364, 0.0001
        %v366 = vmul.f32 %v361, %v365
        %v367 = vrcp.pop %v366
        %v368 = vmul.f32 %v366, %v367
        %v369 = vsub.f32 2.0, %v368
        %v370 = vmul.f32 %v367, %v369
        %v371 = vand.u32 2147483647, %v351
        %v372 = vmul.f32 %v365, %v370
        %v373 = vmul.f32 %v371, %v372
        %v374 = vlog2.pop %v373
        %v375 = vmul.f32 %v374, 0.6931472
        %v376 = vstv %s232
        %v377 = vmul.f32 %v376, %v375
        %v378 = vmul.f32 %v377, 1.442695
        %v379 = vpow.pop %v378
        %v380 = vand.u32 2147483647, %v353
        %v381 = vmul.f32 %v361, %v370
        %v382 = vmul.f32 %v380, %v381
        %v383 = vlog2.pop %v382
        %v384 = vmul.f32 %v383, 0.6931472
        %v385 = vmul.f32 %v376, %v384
        %v386 = vmul.f32 %v385, 1.442695
        %v387 = vpow.pop %v386
        %v388 = vstv %s226
        %v389 = vmul.f32 %v354, %v388
        %v390 = vand.u32 2147483647, %v389
        %v391 = vlog2.pop %v390
        %v392 = vmul.f32 %v391, 0.6931472
        %v393 = vstv %s234
        %v394 = vmul.f32 %v393, %v392
        %v395 = vmul.f32 %v394, 1.442695
        %v396 = vpow.pop %v395
        %v397 = vadd.f32 %v379, %v387
        %v398 = vlog2.pop %v397
        %v399 = vmul.f32 %v398, 0.6931472
        %v400 = vstv %s236
        %v401 = vmul.f32 %v400, %v399
        %v402 = vmul.f32 %v401, 1.442695
        %v403 = vpow.pop %v402
        %v404 = vadd.f32 %v403, %v396
        %v405 = vadd.f32 %v404, 0.0001
        %v406 = vlog2.pop %v405
        %v407 = vmul.f32 %v406, 0.6931472
        %v408 = vstv %s238
        %v409 = vmul.f32 %v408, %v407
        %v410 = vmul.f32 %v409, 1.442695
        %v411 = vpow.pop %v410
        %v412 = vsub.f32 1.0, %v411
        %v413 = vmul.f32 %v262, %v262
        %v414 = vmul.f32 %v272, %v272
        %v415 = vadd.f32 %v413, %v414
        %v416 = vadd.f32 %v415, %v290
        %v417 = vmul.f32 %v412, %v412
        %v418 = vmul.f32 %v416, %v417
        %v419 = vstv %s239
        %v420 = vadd.s32 %v419, %v245
        %vm421 = vcmp.lt.s32.totalorder %v420, 256
        %v422 = vsel %vm421, %v418, 0.0
        %v423 = vadd.f32 %v422, 0.0
        %424 = vst [vmem:[%s192] sm:$0xff] %v423
        %s425 = sand.u32 %s91, 1
        %s426 = scalar_lea.sflag [#allocation4], %s425
        %s427 = sand.u32 %s91, 1
        %s428 = smul.addr %s427, 8
        %s429 = scalar_lea.vmem [#allocation7], %s428
        // Predicated region
        $region37: #{tpu_custom_call.1} parent=27 // pred_check
          %p430 = pneg %p101
        $region38: #{tpu_custom_call.1} parent=27 // pred_check_branch
          %432 = sbr.rel (%p430) target = $region40
        $region39: #{tpu_custom_call.1} parent=27 // pred_region
          %s434 = ssub.s32 128, 128
          %435 = vsyncadd %s426, %s434
          %s436 = sadd.s32 %s25, %s24
          %s437 = smul.addr %s436, 128
          %s438 = scalar_lea.hbm %s2, %s437
          %s440 = sshll.u32 %s429, 4
          %s441 = int_to_ptr.vmem [resolvable:$true] %s440
          %443 = dma.vmem_to_hbm [thread:$0]  %s441, 128, %s438, %s426
        $region40: #{tpu_custom_call.1} parent=27 // pred_fallthru
          _
      $region28: #{tpu_custom_call.1} parent=5 // pred_fallthru
        _
      %p444 = scmp.le.s32.totalorder 2, %s15
      // Predicated region
      $region41: #{tpu_custom_call.1} parent=5 // pred_check
        %p445 = pneg %p444
      $region42: #{tpu_custom_call.1} parent=5 // pred_check_branch
        %447 = sbr.rel (%p445) target = $region44
      $region43: #{tpu_custom_call.1} parent=5 // pred_region
        %s448 = ssub.s32 %s15, 2
        // Predicated region
        $region45: #{tpu_custom_call.1} parent=43 // pred_check
          %p449 = pneg %p107
        $region46: #{tpu_custom_call.1} parent=43 // pred_check_branch
          %451 = sbr.rel (%p449) target = $region48
        $region47: #{tpu_custom_call.1} parent=43 // pred_region
          %s452 = sand.u32 %s92, 1
          %s453 = scalar_lea.sflag [#allocation4], %s452
          %s454 = sand.u32 %s92, 1
          %s455 = smul.addr %s454, 8
          %s456 = scalar_lea.vmem [#allocation7], %s455
          %457 = dma.done %s453, 128
        $region48: #{tpu_custom_call.1} parent=43 // pred_fallthru
          _
      $region44: #{tpu_custom_call.1} parent=5 // pred_fallthru
        _
    $region6: #{tpu_custom_call.1} parent=1 // loop_footer
      %s19 = sadd.s32 1, %s15
    $region7: #{tpu_custom_call.1} parent=1 // loop_footer_branch
      %14 = sbr.rel target = $region3
    $region8: #{tpu_custom_call.1} parent=1 // loop_exit
      _
    %458 = vsyncpa [#allocation3], 1
    %s459 = scalar_lea.sflag [#allocation3], 1
    %460 = vsyncpa %s459, 1
    %461 = vsyncpa [#allocation4], 1
    %s462 = scalar_lea.sflag [#allocation4], 1
    %463 = vsyncpa %s462, 1
    %464 = vsyncpa [#allocation5], 1
    %s465 = scalar_lea.sflag [#allocation5], 1
    %466 = vsyncpa %s465, 1

</llo_original>
